<compile_context>
chip_gen: v5e
topology: v5e:2x2
jax: 0.10.0
libtpu: 0.0.40
codegen_flags: <defaults>
</compile_context>

<pallas_src>
import functools

import jax
import jax.numpy as jnp
from jax import lax
from jax.experimental import pallas as pl
from jax.experimental.pallas import tpu as pltpu


def _global_pool_kernel(x_ref, o_ref, sum_ref, max_ref, *, hw, thw):
    # x_ref : (BN, C, THW) input tile
    # o_ref : (BN, 2, C)   output block (resident across the reduction axis)
    # sum_ref / max_ref : (BN, C) f32 accumulators (VMEM scratch)
    k = pl.program_id(1)

    @pl.when(k == 0)
    def _init():
        sum_ref[...] = jnp.zeros_like(sum_ref)
        max_ref[...] = jnp.full_like(max_ref, -jnp.inf)

    x = x_ref[...].astype(jnp.float32)  # (BN, C, THW)

    if hw % thw != 0:
        # Last spatial tile is partial: pad lanes contribute 0 to the sum and
        # -inf to the max.
        start = k * thw
        lane = lax.broadcasted_iota(jnp.int32, x.shape, 2)
        valid = (start + lane) < hw
        x_sum = jnp.where(valid, x, jnp.float32(0.0))
        x_max = jnp.where(valid, x, -jnp.inf)
    else:
        x_sum = x
        x_max = x

    sum_ref[...] = sum_ref[...] + jnp.sum(x_sum, axis=-1)
    max_ref[...] = jnp.maximum(max_ref[...], jnp.max(x_max, axis=-1))

    @pl.when(k == pl.num_programs(1) - 1)
    def _finalize():
        inv = jnp.float32(1.0 / hw)  # static divisor, applied once
        o_ref[:, 0, :] = (sum_ref[...] * inv).astype(o_ref.dtype)
        o_ref[:, 1, :] = max_ref[...].astype(o_ref.dtype)


def global_pool(x, *, max_block_bytes=4 * 1024 * 1024):
    """x: (N, C, H, W) -> (N, 2*C, 1, 1), matching torch GlobalPool.forward."""
    N, C, H, W = x.shape
    HW = H * W
    x_flat = x.reshape(N, C, HW)
    itemsize = jnp.dtype(x.dtype).itemsize

    slab_bytes = C * HW * itemsize  # one batch element, fully flattened
    if slab_bytes <= max_block_bytes:
        # Whole spatial extent fits in one tile: batch several N per grid step
        # to amortize per-step overhead and get larger DMAs / denser stores.
        thw = HW
        bn = int(max(1, min(N, max_block_bytes // max(slab_bytes, 1))))
        while N % bn != 0:  # avoid partial batch blocks
            bn -= 1
    else:
        # Large spatial extent: tile the reduction axis in 128-lane multiples,
        # ~max_block_bytes per input block (safe under v7x's 64 MiB VMEM with
        # double buffering; no vmem_limit_bytes override needed).
        bn = 1
        thw = (max_block_bytes // (C * itemsize)) // 128 * 128
        thw = int(max(128, min(thw, HW)))

    grid = (pl.cdiv(N, bn), pl.cdiv(HW, thw))
    kernel = functools.partial(_global_pool_kernel, hw=HW, thw=thw)

    out = pl.pallas_call(
        kernel,
        out_shape=jax.ShapeDtypeStruct((N, 2, C), x.dtype),
        grid_spec=pltpu.PrefetchScalarGridSpec(
            num_scalar_prefetch=0,
            grid=grid,
            in_specs=[pl.BlockSpec((bn, C, thw), lambda n, k: (n, 0, k))],
            out_specs=pl.BlockSpec((bn, 2, C), lambda n, k: (n, 0, 0)),
            scratch_shapes=[
                pltpu.VMEM((bn, C), jnp.float32),  # running sum
                pltpu.VMEM((bn, C), jnp.float32),  # running max
            ],
        ),
        compiler_params=pltpu.CompilerParams(
            dimension_semantics=("parallel", "arbitrary"),
        ),
    )(x_flat)

    # (N, 2, C) row-major is [avg_0..avg_{C-1}, max_0..max_{C-1}] per batch,
    # i.e. exactly torch.cat([avg_out, max_out], dim=1) after reshape.
    return out.reshape(N, 2 * C, 1, 1)


def _reference(x):
    ref_avg = jnp.mean(x, axis=(2, 3))
    ref_max = jnp.max(x, axis=(2, 3))
    N, C = x.shape[0], x.shape[1]
    return jnp.concatenate([ref_avg, ref_max], axis=1).reshape(N, 2 * C, 1, 1)


if __name__ == "__main__":
    key = jax.random.PRNGKey(0)

    # Main test (small shapes consistent with the module): single-tile path.
    N, C, H, W = 2, 4, 16, 16
    x = jax.random.normal(key, (N, C, H, W), dtype=jnp.float32)
    out = jax.block_until_ready(global_pool(x))
    assert out.shape == (N, 2 * C, 1, 1), out.shape
    assert jnp.allclose(out, _reference(x), atol=1e-5, rtol=1e-5)

    # Secondary test: force the tiled-reduction path with a partial last tile
    # (HW=169, THW=128) to exercise the masking + accumulator logic.
    key2 = jax.random.PRNGKey(0)
    x2 = jax.random.normal(key2, (2, 8, 13, 13), dtype=jnp.float32)
    out2 = jax.block_until_ready(global_pool(x2, max_block_bytes=4096))
    assert out2.shape == (2, 16, 1, 1), out2.shape
    assert jnp.allclose(out2, _reference(x2), atol=1e-5, rtol=1e-5)

    print("KERNEL_OK")
</pallas_src>

<mosaic_0001>
module attributes {stable_mosaic.version = 11 : i64} {
  func.func @_global_pool_kernel(%arg0: i32, %arg1: i32, %arg2: memref<2x4x256xf32, #tpu.memory_space<vmem>>, %arg3: memref<2x2x4xf32, #tpu.memory_space<vmem>>, %arg4: memref<2x4xf32, #tpu.memory_space<vmem>>, %arg5: memref<2x4xf32, #tpu.memory_space<vmem>>) attributes {dimension_semantics = [#tpu.dimension_semantics<parallel>, #tpu.dimension_semantics<arbitrary>], iteration_bounds = array<i64: 1, 1>, scalar_prefetch = 0 : i64, scratch_operands = 2 : i64, tpu.core_type = #tpu.core_type<tc>, window_params = [{transform_indices = @transform_0, window_bounds = array<i64: 2, 4, 256>}, {transform_indices = @transform_1, window_bounds = array<i64: 2, 2, 4>}]} {
    %c0_i32 = arith.constant 0 : i32
    %0 = arith.cmpi eq, %arg1, %c0_i32 : i32
    %1 = arith.extui %0 : i1 to i32
    %c0_i32_0 = arith.constant 0 : i32
    %2 = arith.cmpi ne, %1, %c0_i32_0 : i32
    scf.if %2 {
      %cst_14 = arith.constant 0.000000e+00 : f32
      %15 = vector.broadcast %cst_14 : f32 to vector<2x4xf32>
      %c0_15 = arith.constant 0 : index
      %c0_16 = arith.constant 0 : index
      %16 = vector.load %arg4[%c0_15, %c0_16] : memref<2x4xf32, #tpu.memory_space<vmem>>, vector<2x4xf32>
      tpu.vector_store %arg4[%c0_15, %c0_16], %15 {strides = array<i32>} : memref<2x4xf32, #tpu.memory_space<vmem>>, vector<2x4xf32>,
      %cst_17 = arith.constant 0xFF800000 : f32
      %17 = vector.broadcast %cst_17 : f32 to vector<2x4xf32>
      %c0_18 = arith.constant 0 : index
      %c0_19 = arith.constant 0 : index
      %18 = vector.load %arg5[%c0_18, %c0_19] : memref<2x4xf32, #tpu.memory_space<vmem>>, vector<2x4xf32>
      tpu.vector_store %arg5[%c0_18, %c0_19], %17 {strides = array<i32>} : memref<2x4xf32, #tpu.memory_space<vmem>>, vector<2x4xf32>,
    } else {
    }
    %c0 = arith.constant 0 : index
    %c0_1 = arith.constant 0 : index
    %c0_2 = arith.constant 0 : index
    %3 = vector.load %arg2[%c0, %c0_1, %c0_2] : memref<2x4x256xf32, #tpu.memory_space<vmem>>, vector<2x4x256xf32>
    %c0_3 = arith.constant 0 : index
    %c0_4 = arith.constant 0 : index
    %4 = vector.load %arg4[%c0_3, %c0_4] : memref<2x4xf32, #tpu.memory_space<vmem>>, vector<2x4xf32>
    %cst = arith.constant dense<0.000000e+00> : vector<2x4xf32>
    %5 = vector.multi_reduction <add>, %3, %cst [2] : vector<2x4x256xf32> to vector<2x4xf32>
    %6 = arith.addf %4, %5 : vector<2x4xf32>
    %c0_5 = arith.constant 0 : index
    %c0_6 = arith.constant 0 : index
    %7 = vector.load %arg4[%c0_5, %c0_6] : memref<2x4xf32, #tpu.memory_space<vmem>>, vector<2x4xf32>
    tpu.vector_store %arg4[%c0_5, %c0_6], %6 {strides = array<i32>} : memref<2x4xf32, #tpu.memory_space<vmem>>, vector<2x4xf32>,
    %c0_7 = arith.constant 0 : index
    %c0_8 = arith.constant 0 : index
    %8 = vector.load %arg5[%c0_7, %c0_8] : memref<2x4xf32, #tpu.memory_space<vmem>>, vector<2x4xf32>
    %cst_9 = arith.constant dense<0xFF800000> : vector<2x4xf32>
    %9 = vector.multi_reduction <maximumf>, %3, %cst_9 [2] : vector<2x4x256xf32> to vector<2x4xf32>
    %10 = arith.maximumf %8, %9 : vector<2x4xf32>
    %c0_10 = arith.constant 0 : index
    %c0_11 = arith.constant 0 : index
    %11 = vector.load %arg5[%c0_10, %c0_11] : memref<2x4xf32, #tpu.memory_space<vmem>>, vector<2x4xf32>
    tpu.vector_store %arg5[%c0_10, %c0_11], %10 {strides = array<i32>} : memref<2x4xf32, #tpu.memory_space<vmem>>, vector<2x4xf32>,
    %c0_i32_12 = arith.constant 0 : i32
    %12 = arith.cmpi eq, %arg1, %c0_i32_12 : i32
    %13 = arith.extui %12 : i1 to i32
    %c0_i32_13 = arith.constant 0 : i32
    %14 = arith.cmpi ne, %13, %c0_i32_13 : i32
    scf.if %14 {
      %c0_14 = arith.constant 0 : index
      %c0_15 = arith.constant 0 : index
      %15 = vector.load %arg4[%c0_14, %c0_15] : memref<2x4xf32, #tpu.memory_space<vmem>>, vector<2x4xf32>
      %cst_16 = arith.constant 3.906250e-03 : f32
      %16 = vector.broadcast %cst_16 : f32 to vector<2x4xf32>
      %17 = arith.mulf %15, %16 : vector<2x4xf32>
      %c0_17 = arith.constant 0 : index
      %c0_18 = arith.constant 0 : index
      %c0_19 = arith.constant 0 : index
      %18 = vector.load %arg3[%c0_17, %c0_18, %c0_19] : memref<2x2x4xf32, #tpu.memory_space<vmem>>, vector<2x1x4xf32>
      %19 = vector.shape_cast %18 : vector<2x1x4xf32> to vector<2x4xf32>
      %20 = vector.shape_cast %17 : vector<2x4xf32> to vector<2x1x4xf32>
      tpu.vector_store %arg3[%c0_17, %c0_18, %c0_19], %20 {strides = array<i32>} : memref<2x2x4xf32, #tpu.memory_space<vmem>>, vector<2x1x4xf32>,
      %c0_20 = arith.constant 0 : index
      %c0_21 = arith.constant 0 : index
      %21 = vector.load %arg5[%c0_20, %c0_21] : memref<2x4xf32, #tpu.memory_space<vmem>>, vector<2x4xf32>
      %c0_22 = arith.constant 0 : index
      %c1 = arith.constant 1 : index
      %c0_23 = arith.constant 0 : index
      %22 = vector.load %arg3[%c0_22, %c1, %c0_23] : memref<2x2x4xf32, #tpu.memory_space<vmem>>, vector<2x1x4xf32>
      %23 = vector.shape_cast %22 : vector<2x1x4xf32> to vector<2x4xf32>
      %24 = vector.shape_cast %21 : vector<2x4xf32> to vector<2x1x4xf32>
      tpu.vector_store %arg3[%c0_22, %c1, %c0_23], %24 {strides = array<i32>} : memref<2x2x4xf32, #tpu.memory_space<vmem>>, vector<2x1x4xf32>,
    } else {
    }
    return
  }
  func.func @transform_0(%arg0: i32, %arg1: i32) -> (i32, i32, i32) {
    %c0_i32 = arith.constant 0 : i32
    %c0_i32_0 = arith.constant 0 : i32
    return %arg0, %c0_i32, %arg1 : i32, i32, i32
  }
  func.func @transform_1(%arg0: i32, %arg1: i32) -> (i32, i32, i32) {
    %c0_i32 = arith.constant 0 : i32
    %c0_i32_0 = arith.constant 0 : i32
    %c0_i32_1 = arith.constant 0 : i32
    return %arg0, %c0_i32, %c0_i32_0 : i32, i32, i32
  }
}

</mosaic_0001>

<llo_original>
// kernel: tpu_custom_call.1
$region0: #{tpu_custom_call.1}
  #allocation0 [shape = 'u32[]', space=smem, size = 0x4, offset = 0x4, fixed_abs, tag = 'smem constant byte address 0x4 - core index']
  #allocation1 [shape = 'u32[72,128]{1,0:T(1,128)}', space=vmem, size = 0x9000, scoped, tag = 'internal scratch']
  #allocation2 [shape = 'f32[2,4]{1,0:T(2,128)}', space=vmem, size = 0x400, scoped, tag = 'scratch operand']
  #allocation3 [shape = 'f32[2,4]{1,0:T(2,128)}', space=vmem, size = 0x400, scoped, tag = 'scratch operand']
  %s0 = inlined_call_operand.hbm [shape: f32[2,4,256], index: 0, kind: input, shape index: {}]
  %s1 = inlined_call_operand.hbm [shape: f32[2,2,4], index: 1, kind: output, shape index: {}]
  %s2 = sld [smem:[#allocation0]]
  $region26: #{tpu_custom_call.1} parent=0
    _
  %s4 = ssub.s32 1, %s2
  %s5 = scalar_select 0, %s4, %s2
  $region1: #{tpu_custom_call.1} parent=0
    #allocation4 [shape = 'u8[8192]{0}', space=vmem, size = 0x2000, scoped, tag = 'input window, operand 0, single buffered']
    #allocation5 [shape = 's32[1]{0}', space=sflag, size = 0x4, scoped, tag = 'scoped memory for tpu_custom_call.1']
    #allocation6 [shape = 's32[1]{0}', space=sflag, size = 0x4, scoped, tag = 'scoped memory for tpu_custom_call.1']
    #allocation7 [shape = 'u8[2048]{0}', space=vmem, size = 0x800, scoped, tag = 'output window, operand 0, single buffered']
    %6 = vsyncpa [#allocation5], 0
    %7 = vsyncpa [#allocation6], 0
    // Predicated region
    $region2: #{tpu_custom_call.1} parent=1 // pred_check
      _
    $region3: #{tpu_custom_call.1} parent=1 // pred_check_branch
      %9 = sbr.rel (0) target = $region5
    $region4: #{tpu_custom_call.1} parent=1 // pred_region
      %11 = vsyncadd [#allocation5], 0
      %s12 = sshll.u32 %s0, 4
      %s13 = int_to_ptr.hbm [resolvable:$true] %s12
      %s14 = sshll.u32 [#allocation4], 4
      %s15 = int_to_ptr.vmem [resolvable:$true] %s14
      %20 = dma.hbm_to_vmem [thread:$0]  %s13, 256, %s15, [#allocation5], 128, 128, 8
    $region5: #{tpu_custom_call.1} parent=1 // pred_fallthru
      _
    // Predicated region
    $region6: #{tpu_custom_call.1} parent=1 // pred_check
      _
    $region7: #{tpu_custom_call.1} parent=1 // pred_check_branch
      %22 = sbr.rel (0) target = $region9
    $region8: #{tpu_custom_call.1} parent=1 // pred_region
      %24 = dma.done [#allocation5], 256
    $region9: #{tpu_custom_call.1} parent=1 // pred_fallthru
      _
    %p25 = scmp.eq.s32.totalorder 0, 0
    // Predicated region
    $region10: #{tpu_custom_call.1} parent=1 // pred_check
      %p26 = pneg %p25
    $region11: #{tpu_custom_call.1} parent=1 // pred_check_branch
      %28 = sbr.rel (%p26) target = $region13
    $region12: #{tpu_custom_call.1} parent=1 // pred_region
      %vm29 = vcmask 25600
      %30 = vst.msk [vmem:[#allocation2] sm:$0x3] %vm29, 0.0
      %31 = vst.msk [vmem:[#allocation3] sm:$0x3] %vm29, -inf
    $region13: #{tpu_custom_call.1} parent=1 // pred_fallthru
      _
    %v32 = vld [vmem:[#allocation4] sm:$0xff]
    %v33 = vld [vmem:[#allocation4 + $0x8] sm:$0xff]
    %v34 = vld [vmem:[#allocation2] sm:$0x3]
    %37 = vst [vmem:[#allocation1] ss:$2 sm:$0xff] %v32
    %v38 = vld.sshfl [vmem:[#allocation1] sm:$0xff pattern:$0x75316420]
    %v39 = vld.sshfl [vmem:[#allocation1 + $0x8] sm:$0xff pattern:$0x75316420]
    %s40 = scalar_lea.vmem [#allocation1], 16
    %41 = vst [vmem:[%s40] ss:$2 sm:$0xff] %v33
    %v42 = vld.sshfl [vmem:[#allocation1 + $0x10] sm:$0xff pattern:$0x75316420]
    %v43 = vld.sshfl [vmem:[#allocation1 + $0x18] sm:$0xff pattern:$0x75316420]
    %vm48 = vcmask 1043456
    %v49 = vsel %vm48, %v38, 0.0
    %v50 = vsel %vm48, %v39, 0.0
    %v51 = vadd.f32 %v49, %v50
    %52 = vadd.xlane.f32.xlu0 %v51
    %v53 = vpop.xlane.xlu0 %52
    %v54 = vsel %vm48, %v42, 0.0
    %v55 = vsel %vm48, %v43, 0.0
    %v56 = vadd.f32 %v54, %v55
    %57 = vadd.xlane.f32.xlu0 %v56
    %v58 = vpop.xlane.xlu0 %57
    %v61 = vlaneseq
    %v62 = vand.u32 %v61, 127
    %v63 = vperm.slane %v53, %v62
    %v64 = vperm.slane %v58, %v62
    %vm65 = vcmask 1041409
    %v66 = vsel %vm65, %v64, %v63
    %v68 = vadd.f32 %v34, %v66
    %vm69 = vcmask 25600
    %70 = vst.msk [vmem:[#allocation2] sm:$0x3] %vm69, %v68
    %v71 = vld [vmem:[#allocation3] sm:$0x3]
    %72 = vst [vmem:[#allocation1] ss:$2 sm:$0xff] %v32
    %v73 = vld.sshfl [vmem:[#allocation1] sm:$0xff pattern:$0x75316420]
    %v74 = vld.sshfl [vmem:[#allocation1 + $0x8] sm:$0xff pattern:$0x75316420]
    %s75 = scalar_lea.vmem [#allocation1], 16
    %76 = vst [vmem:[%s75] ss:$2 sm:$0xff] %v33
    %v77 = vld.sshfl [vmem:[#allocation1 + $0x10] sm:$0xff pattern:$0x75316420]
    %v78 = vld.sshfl [vmem:[#allocation1 + $0x18] sm:$0xff pattern:$0x75316420]
    %v83 = vsel %vm48, %v73, -inf
    %v84 = vsel %vm48, %v74, -inf
    %v85 = vmax.f32 %v83, %v84
    %86 = vmax.xlane.f32.xlu0 %v85
    %v87 = vpop.xlane.xlu0 %86
    %v88 = vsel %vm48, %v77, -inf
    %v89 = vsel %vm48, %v78, -inf
    %v90 = vmax.f32 %v88, %v89
    %91 = vmax.xlane.f32.xlu0 %v90
    %v92 = vpop.xlane.xlu0 %91
    %v95 = vperm.slane %v87, %v62
    %v96 = vperm.slane %v92, %v62
    %v97 = vsel %vm65, %v96, %v95
    %v99 = vmax.f32 %v71, %v97
    %100 = vst.msk [vmem:[#allocation3] sm:$0x3] %vm69, %v99
    // Predicated region
    $region14: #{tpu_custom_call.1} parent=1 // pred_check
      %p101 = pneg %p25
    $region15: #{tpu_custom_call.1} parent=1 // pred_check_branch
      %103 = sbr.rel (%p101) target = $region17
    $region16: #{tpu_custom_call.1} parent=1 // pred_region
      %v104 = vld [vmem:[#allocation2] sm:$0x3]
      %v105 = vmul.f32 %v104, 0.00390625
      %v107 = vrot.slane %v105, 1
      %vm109 = vcmask 24576
      %110 = vst.msk [vmem:[#allocation7] sm:$0x1] %vm109, %v105
      %111 = vst.msk [vmem:[#allocation7 + $0x2] sm:$0x1] %vm109, %v107
      %v112 = vld [vmem:[#allocation3] sm:$0x3]
      %v114 = vrot.slane %v112, 1
      %116 = vst.msk [vmem:[#allocation7 + $0x1] sm:$0x1] %vm109, %v112
      %117 = vst.msk [vmem:[#allocation7 + $0x3] sm:$0x1] %vm109, %v114
    $region17: #{tpu_custom_call.1} parent=1 // pred_fallthru
      _
    // Predicated region
    $region18: #{tpu_custom_call.1} parent=1 // pred_check
      _
    $region19: #{tpu_custom_call.1} parent=1 // pred_check_branch
      %119 = sbr.rel (0) target = $region21
    $region20: #{tpu_custom_call.1} parent=1 // pred_region
      %121 = vsyncadd [#allocation6], 0
      %s122 = sshll.u32 [#allocation7], 4
      %s123 = int_to_ptr.vmem [resolvable:$true] %s122
      %s124 = sshll.u32 %s1, 4
      %s125 = int_to_ptr.hbm [resolvable:$true] %s124
      %130 = dma.vmem_to_hbm [thread:$0]  %s123, 64, %s125, [#allocation6], 32, 32, 2
    $region21: #{tpu_custom_call.1} parent=1 // pred_fallthru
      _
    // Predicated region
    $region22: #{tpu_custom_call.1} parent=1 // pred_check
      _
    $region23: #{tpu_custom_call.1} parent=1 // pred_check_branch
      %132 = sbr.rel (0) target = $region25
    $region24: #{tpu_custom_call.1} parent=1 // pred_region
      %134 = dma.done [#allocation6], 64
    $region25: #{tpu_custom_call.1} parent=1 // pred_fallthru
      _
    %135 = vsyncpa [#allocation5], 1
    %136 = vsyncpa [#allocation6], 1

</llo_original>
